<compile_context>
chip_gen: v5e
topology: v5e:2x2
jax: 0.10.0
libtpu: 0.0.40
codegen_flags: <defaults>
</compile_context>

<pallas_src>
import jax
import jax.numpy as jnp
import numpy as np
from jax.experimental import pallas as pl
from jax.experimental.pallas import tpu as pltpu


# ----------------------------- vocabularies (synthetic) -----------------------------
EVENT_TYPES = [f"etype_{i}" for i in range(10)]
POL_TYPES = ["Positive", "Negative"]
MOD_TYPES = ["Asserted", "Other", "Unknown"]
GEN_TYPES = ["Specific", "Generic"]
TEN_TYPES = ["Past", "Present", "Future", "Unspecified"]


def _round_up(x, m):
    return ((x + m - 1) // m) * m


# ---------------------------------- Pallas kernel -----------------------------------
def _make_fused_kernel(num_features, vpad, vtot):
    """Fused kernel: all symbolic pair features for one (row, col) tile of the pair grid.

    idx_row_ref : [TM, NF]        int32   vocab indices, this row block   (tgt / i side)
    idx_col_ref : [TN, NF]        int32   vocab indices, this col block   (src / j side)
    table_ref   : [Vtot, NF*F]    float32 block-diagonal embedding tables (Vtot = 128-pad)
    wa_ref      : [NF*F, NF*L]    float32 block-diag Linear weight on src  (emb[j])
    wb_ref      : [NF*F, NF*L]    float32 block-diag Linear weight on tgt  (emb[i])
    wc_ref      : [NF*F, NF*L]    bf16/f32 block-diag Linear weight on prod (emb[i]*emb[j])
    b_ref       : [1, NF*L]       float32 concatenated biases
    out_ref     : [TM, TN, NF*L]  float32 pairwise latents, out[i_loc, j_loc, :]
    """

    def kernel(idx_row_ref, idx_col_ref, table_ref, wa_ref, wb_ref, wc_ref, b_ref,
               out_ref):
        tm = idx_row_ref.shape[0]
        tn = idx_col_ref.shape[0]
        nff = table_ref.shape[1]                         # NF * F
        nfl = out_ref.shape[2]                           # NF * L

        def onehot(idx_ref_local, rows):
            # One 128-lane iota; one comparison per feature (unrolled).  Per-feature
            # vocab blocks are disjoint, so summing the hits builds the fused one-hot.
            col = jax.lax.broadcasted_iota(jnp.int32, (rows, vtot), 1)
            oh = None
            for f in range(num_features):
                hit = (col == idx_ref_local[:, f:f + 1] + f * vpad).astype(jnp.float32)
                oh = hit if oh is None else oh + hit
            return oh                                    # [rows, Vtot]

        # Embedding lookup as one-hot matmul (MXU friendly, exact in f32).
        emb_row = jnp.dot(onehot(idx_row_ref, tm), table_ref[...],
                          preferred_element_type=jnp.float32)            # [TM, NF*F]
        emb_col = jnp.dot(onehot(idx_col_ref, tn), table_ref[...],
                          preferred_element_type=jnp.float32)            # [TN, NF*F]

        # Per-row / per-col linear terms; bias folded into the src(j) term.
        a_src = jnp.dot(emb_col, wa_ref[...],
                        preferred_element_type=jnp.float32) + b_ref[...]  # [TN, NF*L]
        t_tgt = jnp.dot(emb_row, wb_ref[...],
                        preferred_element_type=jnp.float32)               # [TM, NF*L]

        # prod[i_loc, j_loc] = emb[i] * emb[j]  (f32 elementwise -- v5e VPU has no bf16);
        # the dominant matmul runs with bf16 operands (wc_ref dtype) + f32 accumulation.
        prod = emb_row[:, None, :] * emb_col[None, :, :]                  # [TM, TN, NF*F]
        c = jnp.dot(prod.reshape(tm * tn, nff).astype(wc_ref.dtype), wc_ref[...],
                    preferred_element_type=jnp.float32).reshape(tm, tn, nfl)

        # Broadcast-add epilogue (no tile/repeat temporaries), ReLU, lane-dense store.
        out_ref[...] = jnp.maximum(c + a_src[None, :, :] + t_tgt[:, None, :], 0.0)

    return kernel


def _pick_tiles(n):
    """(TM, TN) tile sizes for the n x n pair grid (TN must be a multiple of 8)."""
    if n <= 128:
        tn = _round_up(n, 8)
        # 2 row programs when legal so both v7x TensorCores get work at small N too.
        tm = tn // 2 if tn % 16 == 0 else tn
        return tm, tn
    # Large N: ~<32 MiB live VMEM with f32 epilogue + bf16 prod matmul; many programs.
    return 128, 64


def _build_forward(num_features, vpad, vtot, feat_size, latent_size, n_events):
    """Build the jitted fused forward for a fixed number of events."""
    NF, F, L, N = num_features, feat_size, latent_size, n_events
    NFF, NFL = NF * F, NF * L

    TM, TN = _pick_tiles(N)
    np_r = _round_up(N, TM)
    np_c = _round_up(N, TN)
    grid = (np_r // TM, np_c // TN)

    kernel = _make_fused_kernel(NF, vpad, vtot)

    pallas_fn = pl.pallas_call(
        kernel,
        out_shape=jax.ShapeDtypeStruct((np_r, np_c, NFL), jnp.float32),
        grid=grid,
        in_specs=[
            pl.BlockSpec((TM, NF), lambda i, j: (i, 0)),       # idx, row block (i / tgt)
            pl.BlockSpec((TN, NF), lambda i, j: (j, 0)),       # idx, col block (j / src)
            pl.BlockSpec((vtot, NFF), lambda i, j: (0, 0)),    # block-diag tables (resident)
            pl.BlockSpec((NFF, NFL), lambda i, j: (0, 0)),     # block-diag W_src   (resident)
            pl.BlockSpec((NFF, NFL), lambda i, j: (0, 0)),     # block-diag W_tgt   (resident)
            pl.BlockSpec((NFF, NFL), lambda i, j: (0, 0)),     # block-diag W_prod  (resident)
            pl.BlockSpec((1, NFL), lambda i, j: (0, 0)),       # biases             (resident)
        ],
        out_specs=pl.BlockSpec((TM, TN, NFL), lambda i, j: (i, j, 0)),
        compiler_params=pltpu.CompilerParams(
            # rows shard across TensorCores (v7x); cols are the inner sequential axis.
            dimension_semantics=("parallel", "arbitrary"),
            vmem_limit_bytes=48 * 1024 * 1024),
    )

    def fwd(idx, table_bd, wa_bd, wb_bd, wc_bd, bias_all):
        # Pad event rows to tile multiples (padded rows use vocab id 0; sliced off below).
        idx_row = idx if np_r == N else jnp.pad(idx, ((0, np_r - N), (0, 0)))
        idx_col = idx if np_c == N else jnp.pad(idx, ((0, np_c - N), (0, 0)))
        slab = pallas_fn(idx_row, idx_col, table_bd, wa_bd, wb_bd, wc_bd, bias_all)
        if np_r == N and np_c == N:
            return slab                      # fused [N, N, NF*L] slab, no extra HBM pass
        return slab[:N, :N, :]
    return jax.jit(fwd)


# ---------------------------- JAX module (param container) --------------------------
class SymbolicFeaturesEncoderPallas:
    """Deterministic-init JAX/Pallas port of SymbolicFeaturesEncoder (eval mode)."""

    _FEATURE_DEFS = [
        ("use_typ_features", "event_type", None),        # vocab = event_types (ctor arg)
        ("use_pol_features", "event_polarity", POL_TYPES),
        ("use_mod_features", "event_modality", MOD_TYPES),
        ("use_gen_features", "event_genericity", GEN_TYPES),
        ("use_ten_features", "event_tense", TEN_TYPES),
    ]

    def __init__(self, configs, event_types, key, prod_matmul_dtype=jnp.bfloat16):
        self.configs = configs
        self.feature_size = configs["feature_size"]
        self.latent_size = configs["latent_size"]
        self.event_types = event_types
        self.prod_matmul_dtype = prod_matmul_dtype
        self.params = {}  # fkey -> (embed_table [V,F], weight_t [3F,L], bias [L], vocab)

        F, L = self.feature_size, self.latent_size
        for flag, fkey, vocab in self._FEATURE_DEFS:
            if not configs[flag]:
                continue
            vocab = event_types if vocab is None else vocab
            V = len(vocab)
            key, k_e, k_w, k_b = jax.random.split(key, 4)
            # embedding re-initialized uniform(-0.5, 0.5) as in the PyTorch __init__
            table = jax.random.uniform(k_e, (V, F), jnp.float32, -0.5, 0.5)
            # nn.Linear default: U(-1/sqrt(fan_in), 1/sqrt(fan_in)), fan_in = 3F
            bound = 1.0 / np.sqrt(3 * F)
            weight_t = jax.random.uniform(k_w, (3 * F, L), jnp.float32, -bound, bound)
            bias = jax.random.uniform(k_b, (L,), jnp.float32, -bound, bound)
            self.params[fkey] = (table, weight_t, bias, vocab)

        # ---- pack all enabled features ONCE into fused block-diagonal operands ----
        enabled = self.enabled_features
        self.num_features = NF = len(enabled)
        self._fwd_cache = {}  # event-count -> jitted fused forward
        if NF == 0:
            return
        Vmax = max(len(self.params[k][3]) for k in enabled)
        self.vpad = vpad = _round_up(Vmax, 8)             # per-feature vocab stride
        self.vtot = vtot = _round_up(NF * vpad, 128)      # pad fused vocab axis to 128 lanes
        table_bd = np.zeros((vtot, NF * F), np.float32)
        wa_bd = np.zeros((NF * F, NF * L), np.float32)
        wb_bd = np.zeros((NF * F, NF * L), np.float32)
        wc_bd = np.zeros((NF * F, NF * L), np.float32)
        bias_all = np.zeros((1, NF * L), np.float32)
        for f, fkey in enumerate(enabled):
            table, weight_t, bias, vocab = self.params[fkey]
            V = len(vocab)
            w = np.asarray(weight_t)                      # [3F, L]
            table_bd[f * vpad:f * vpad + V, f * F:(f + 1) * F] = np.asarray(table)
            wa_bd[f * F:(f + 1) * F, f * L:(f + 1) * L] = w[0:F]          # src  (emb[j])
            wb_bd[f * F:(f + 1) * F, f * L:(f + 1) * L] = w[F:2 * F]      # tgt  (emb[i])
            wc_bd[f * F:(f + 1) * F, f * L:(f + 1) * L] = w[2 * F:3 * F]  # prod
            bias_all[0, f * L:(f + 1) * L] = np.asarray(bias)
        self.table_bd = jnp.asarray(table_bd)                             # f32 (exact gather)
        self.wa_bd = jnp.asarray(wa_bd)                                   # f32
        self.wb_bd = jnp.asarray(wb_bd)                                   # f32
        self.wc_bd = jnp.asarray(wc_bd).astype(prod_matmul_dtype)         # bf16 by default
        self.bias_all = jnp.asarray(bias_all)

    @property
    def enabled_features(self):
        return [fkey for flag, fkey, _ in self._FEATURE_DEFS if self.configs[flag]]

    def _indices(self, events):
        # host-side glue: event attribute string -> vocab index (data prep, not compute)
        N = len(events)
        idx = np.empty((N, self.num_features), np.int32)
        for f, fkey in enumerate(self.enabled_features):
            vocab = self.params[fkey][3]
            for n, e in enumerate(events):
                idx[n, f] = vocab.index(e[fkey])
        return idx

    def forward_fused(self, events):
        """Optimized entry point: fused [N, N, NF*L] slab (feature f = lanes f*L:(f+1)*L)."""
        if self.num_features == 0:
            return None
        N = len(events)
        fwd = self._fwd_cache.get(N)
        if fwd is None:
            fwd = _build_forward(self.num_features, self.vpad, self.vtot,
                                 self.feature_size, self.latent_size, N)
            self._fwd_cache[N] = fwd
        return fwd(jnp.asarray(self._indices(events)), self.table_bd, self.wa_bd,
                   self.wb_bd, self.wc_bd, self.bias_all)

    def __call__(self, events):
        """PyTorch-parity API: list of per-feature [N, N, L] tensors.

        NOTE: the per-feature split re-reads the fused slab once; consumers that can take
        the packed layout should use forward_fused() and avoid that extra HBM pass.
        """
        if self.num_features == 0:
            return []
        slab = self.forward_fused(events)
        L = self.latent_size
        return [slab[:, :, f * L:(f + 1) * L] for f in range(self.num_features)]


# ------------------------------------ reference --------------------------------------
def _ref_feature(ids, table, weight_t, bias):
    emb = table[ids]                                                 # [N, F]
    n, d = emb.shape
    src = jnp.broadcast_to(emb[None, :, :], (n, n, d))               # src[i,j] = emb[j]
    tgt = jnp.broadcast_to(emb[:, None, :], (n, n, d))               # tgt[i,j] = emb[i]
    pair = jnp.concatenate([src, tgt, src * tgt], axis=2)            # [N, N, 3F]
    return jax.nn.relu(pair @ weight_t + bias)                       # [N, N, L]


def _make_events(n, seed=0):
    rng = np.random.RandomState(seed)
    events = []
    for _ in range(n):
        events.append({
            "event_type": EVENT_TYPES[int(rng.randint(len(EVENT_TYPES)))],
            "event_polarity": POL_TYPES[int(rng.randint(len(POL_TYPES)))],
            "event_modality": MOD_TYPES[int(rng.randint(len(MOD_TYPES)))],
            "event_genericity": GEN_TYPES[int(rng.randint(len(GEN_TYPES)))],
            "event_tense": TEN_TYPES[int(rng.randint(len(TEN_TYPES)))],
            "has_correct_trigger": True,
        })
    return events


# -------------------------------------- main ------------------------------------------
if __name__ == "__main__":
    configs = {
        "feature_size": 32,
        "latent_size": 32,
        "use_typ_features": True,
        "use_pol_features": True,
        "use_mod_features": True,
        "use_gen_features": True,
        "use_ten_features": True,
        "typ_noise_prob": 0.0,
        "pol_noise_prob": 0.0,
        "mod_noise_prob": 0.0,
        "gen_noise_prob": 0.0,
        "ten_noise_prob": 0.0,
    }
    L = configs["latent_size"]
    key = jax.random.PRNGKey(0)

    # Same key -> identical parameters; only the prod-matmul operand dtype differs.
    enc_exact = SymbolicFeaturesEncoderPallas(configs, EVENT_TYPES, key,
                                              prod_matmul_dtype=jnp.float32)
    enc_fast = SymbolicFeaturesEncoderPallas(configs, EVENT_TYPES, key,
                                             prod_matmul_dtype=jnp.bfloat16)

    # N=8  : single-program grid               (exact f32 path, tight tolerance)
    # N=16 : (2,1) grid, "parallel" row axis   (both paths)
    # N=13 : non-multiple-of-8 -> padding path (bf16 prod path, loosened tolerance)
    cases = [
        (enc_exact, 8, 1e-5, 1e-5),
        (enc_exact, 16, 1e-5, 1e-5),
        (enc_fast, 13, 2e-2, 1e-2),
        (enc_fast, 16, 2e-2, 1e-2),
    ]
    for enc, N, rtol, atol in cases:
        events = _make_events(N, seed=0)
        slab = jax.block_until_ready(enc.forward_fused(events))          # [N, N, NF*L]
        assert slab.shape == (N, N, enc.num_features * L), slab.shape
        slab_np = np.asarray(slab)

        # correctness check vs. pure-JAX reference of the PyTorch semantics
        for f, fkey in enumerate(enc.enabled_features):
            table, weight_t, bias, vocab = enc.params[fkey]
            ids = jnp.asarray([vocab.index(e[fkey]) for e in events], jnp.int32)
            ref = np.asarray(_ref_feature(ids, table, weight_t, bias))
            got = slab_np[:, :, f * L:(f + 1) * L]
            np.testing.assert_allclose(got, ref, rtol=rtol, atol=atol)

        # PyTorch-parity list API (views of the same slab)
        feats = enc(events)
        assert len(feats) == enc.num_features
        assert all(x.shape == (N, N, L) for x in feats)

    print("KERNEL_OK")
</pallas_src>

<mosaic_0001>
module attributes {stable_mosaic.version = 11 : i64} {
  func.func @kernel(%arg0: i32, %arg1: i32, %arg2: memref<8x5xi32, #tpu.memory_space<vmem>>, %arg3: memref<8x5xi32, #tpu.memory_space<vmem>>, %arg4: memref<128x160xf32, #tpu.memory_space<vmem>>, %arg5: memref<160x160xf32, #tpu.memory_space<vmem>>, %arg6: memref<160x160xf32, #tpu.memory_space<vmem>>, %arg7: memref<160x160xf32, #tpu.memory_space<vmem>>, %arg8: memref<1x160xf32, #tpu.memory_space<vmem>>, %arg9: memref<8x8x160xf32, #tpu.memory_space<vmem>>) attributes {dimension_semantics = [#tpu.dimension_semantics<parallel>, #tpu.dimension_semantics<arbitrary>], iteration_bounds = array<i64: 1, 1>, scalar_prefetch = 0 : i64, scratch_operands = 0 : i64, tpu.core_type = #tpu.core_type<tc>, window_params = [{transform_indices = @transform_0, window_bounds = array<i64: 8, 5>}, {transform_indices = @transform_1, window_bounds = array<i64: 8, 5>}, {pipeline_mode = #tpu.pipeline_mode<synchronous>, transform_indices = @transform_2, window_bounds = array<i64: 128, 160>}, {pipeline_mode = #tpu.pipeline_mode<synchronous>, transform_indices = @transform_3, window_bounds = array<i64: 160, 160>}, {pipeline_mode = #tpu.pipeline_mode<synchronous>, transform_indices = @transform_4, window_bounds = array<i64: 160, 160>}, {pipeline_mode = #tpu.pipeline_mode<synchronous>, transform_indices = @transform_5, window_bounds = array<i64: 160, 160>}, {pipeline_mode = #tpu.pipeline_mode<synchronous>, transform_indices = @transform_6, window_bounds = array<i64: 1, 160>}, {transform_indices = @transform_7, window_bounds = array<i64: 8, 8, 160>}]} {
    %0 = tpu.iota {dimensions = array<i32: 1>} : vector<8x128xi32>
    %c0 = arith.constant 0 : index
    %c0_0 = arith.constant 0 : index
    %1 = vector.load %arg2[%c0, %c0_0] : memref<8x5xi32, #tpu.memory_space<vmem>>, vector<8x1xi32>
    %c0_i32 = arith.constant 0 : i32
    %2 = vector.broadcast %c0_i32 : i32 to vector<8x1xi32>
    %3 = arith.addi %1, %2 : vector<8x1xi32>
    %4 = vector.broadcast %3 : vector<8x1xi32> to vector<8x128xi32>
    %5 = arith.cmpi eq, %0, %4 : vector<8x128xi32>
    %6 = arith.extui %5 : vector<8x128xi1> to vector<8x128xi32>
    %7 = arith.sitofp %6 : vector<8x128xi32> to vector<8x128xf32>
    %c0_1 = arith.constant 0 : index
    %c1 = arith.constant 1 : index
    %8 = vector.load %arg2[%c0_1, %c1] : memref<8x5xi32, #tpu.memory_space<vmem>>, vector<8x1xi32>
    %c16_i32 = arith.constant 16 : i32
    %9 = vector.broadcast %c16_i32 : i32 to vector<8x1xi32>
    %10 = arith.addi %8, %9 : vector<8x1xi32>
    %11 = vector.broadcast %10 : vector<8x1xi32> to vector<8x128xi32>
    %12 = arith.cmpi eq, %0, %11 : vector<8x128xi32>
    %13 = arith.extui %12 : vector<8x128xi1> to vector<8x128xi32>
    %14 = arith.sitofp %13 : vector<8x128xi32> to vector<8x128xf32>
    %15 = arith.addf %7, %14 : vector<8x128xf32>
    %c0_2 = arith.constant 0 : index
    %c2 = arith.constant 2 : index
    %16 = vector.load %arg2[%c0_2, %c2] : memref<8x5xi32, #tpu.memory_space<vmem>>, vector<8x1xi32>
    %c32_i32 = arith.constant 32 : i32
    %17 = vector.broadcast %c32_i32 : i32 to vector<8x1xi32>
    %18 = arith.addi %16, %17 : vector<8x1xi32>
    %19 = vector.broadcast %18 : vector<8x1xi32> to vector<8x128xi32>
    %20 = arith.cmpi eq, %0, %19 : vector<8x128xi32>
    %21 = arith.extui %20 : vector<8x128xi1> to vector<8x128xi32>
    %22 = arith.sitofp %21 : vector<8x128xi32> to vector<8x128xf32>
    %23 = arith.addf %15, %22 : vector<8x128xf32>
    %c0_3 = arith.constant 0 : index
    %c3 = arith.constant 3 : index
    %24 = vector.load %arg2[%c0_3, %c3] : memref<8x5xi32, #tpu.memory_space<vmem>>, vector<8x1xi32>
    %c48_i32 = arith.constant 48 : i32
    %25 = vector.broadcast %c48_i32 : i32 to vector<8x1xi32>
    %26 = arith.addi %24, %25 : vector<8x1xi32>
    %27 = vector.broadcast %26 : vector<8x1xi32> to vector<8x128xi32>
    %28 = arith.cmpi eq, %0, %27 : vector<8x128xi32>
    %29 = arith.extui %28 : vector<8x128xi1> to vector<8x128xi32>
    %30 = arith.sitofp %29 : vector<8x128xi32> to vector<8x128xf32>
    %31 = arith.addf %23, %30 : vector<8x128xf32>
    %c0_4 = arith.constant 0 : index
    %c4 = arith.constant 4 : index
    %32 = vector.load %arg2[%c0_4, %c4] : memref<8x5xi32, #tpu.memory_space<vmem>>, vector<8x1xi32>
    %c64_i32 = arith.constant 64 : i32
    %33 = vector.broadcast %c64_i32 : i32 to vector<8x1xi32>
    %34 = arith.addi %32, %33 : vector<8x1xi32>
    %35 = vector.broadcast %34 : vector<8x1xi32> to vector<8x128xi32>
    %36 = arith.cmpi eq, %0, %35 : vector<8x128xi32>
    %37 = arith.extui %36 : vector<8x128xi1> to vector<8x128xi32>
    %38 = arith.sitofp %37 : vector<8x128xi32> to vector<8x128xf32>
    %39 = arith.addf %31, %38 : vector<8x128xf32>
    %c0_5 = arith.constant 0 : index
    %c0_6 = arith.constant 0 : index
    %40 = vector.load %arg4[%c0_5, %c0_6] : memref<128x160xf32, #tpu.memory_space<vmem>>, vector<128x160xf32>
    %cst = arith.constant dense<0.000000e+00> : vector<8x160xf32>
    %41 = tpu.matmul %39, %40, %cst {dimension_numbers = #tpu.dot_dimension_numbers<[1], [0], [0], [1], [0, 0, 1, 1], [], []>} : vector<8x128xf32>, vector<128x160xf32>, vector<8x160xf32> -> vector<8x160xf32>
    %42 = tpu.iota {dimensions = array<i32: 1>} : vector<8x128xi32>
    %c0_7 = arith.constant 0 : index
    %c0_8 = arith.constant 0 : index
    %43 = vector.load %arg3[%c0_7, %c0_8] : memref<8x5xi32, #tpu.memory_space<vmem>>, vector<8x1xi32>
    %c0_i32_9 = arith.constant 0 : i32
    %44 = vector.broadcast %c0_i32_9 : i32 to vector<8x1xi32>
    %45 = arith.addi %43, %44 : vector<8x1xi32>
    %46 = vector.broadcast %45 : vector<8x1xi32> to vector<8x128xi32>
    %47 = arith.cmpi eq, %42, %46 : vector<8x128xi32>
    %48 = arith.extui %47 : vector<8x128xi1> to vector<8x128xi32>
    %49 = arith.sitofp %48 : vector<8x128xi32> to vector<8x128xf32>
    %c0_10 = arith.constant 0 : index
    %c1_11 = arith.constant 1 : index
    %50 = vector.load %arg3[%c0_10, %c1_11] : memref<8x5xi32, #tpu.memory_space<vmem>>, vector<8x1xi32>
    %c16_i32_12 = arith.constant 16 : i32
    %51 = vector.broadcast %c16_i32_12 : i32 to vector<8x1xi32>
    %52 = arith.addi %50, %51 : vector<8x1xi32>
    %53 = vector.broadcast %52 : vector<8x1xi32> to vector<8x128xi32>
    %54 = arith.cmpi eq, %42, %53 : vector<8x128xi32>
    %55 = arith.extui %54 : vector<8x128xi1> to vector<8x128xi32>
    %56 = arith.sitofp %55 : vector<8x128xi32> to vector<8x128xf32>
    %57 = arith.addf %49, %56 : vector<8x128xf32>
    %c0_13 = arith.constant 0 : index
    %c2_14 = arith.constant 2 : index
    %58 = vector.load %arg3[%c0_13, %c2_14] : memref<8x5xi32, #tpu.memory_space<vmem>>, vector<8x1xi32>
    %c32_i32_15 = arith.constant 32 : i32
    %59 = vector.broadcast %c32_i32_15 : i32 to vector<8x1xi32>
    %60 = arith.addi %58, %59 : vector<8x1xi32>
    %61 = vector.broadcast %60 : vector<8x1xi32> to vector<8x128xi32>
    %62 = arith.cmpi eq, %42, %61 : vector<8x128xi32>
    %63 = arith.extui %62 : vector<8x128xi1> to vector<8x128xi32>
    %64 = arith.sitofp %63 : vector<8x128xi32> to vector<8x128xf32>
    %65 = arith.addf %57, %64 : vector<8x128xf32>
    %c0_16 = arith.constant 0 : index
    %c3_17 = arith.constant 3 : index
    %66 = vector.load %arg3[%c0_16, %c3_17] : memref<8x5xi32, #tpu.memory_space<vmem>>, vector<8x1xi32>
    %c48_i32_18 = arith.constant 48 : i32
    %67 = vector.broadcast %c48_i32_18 : i32 to vector<8x1xi32>
    %68 = arith.addi %66, %67 : vector<8x1xi32>
    %69 = vector.broadcast %68 : vector<8x1xi32> to vector<8x128xi32>
    %70 = arith.cmpi eq, %42, %69 : vector<8x128xi32>
    %71 = arith.extui %70 : vector<8x128xi1> to vector<8x128xi32>
    %72 = arith.sitofp %71 : vector<8x128xi32> to vector<8x128xf32>
    %73 = arith.addf %65, %72 : vector<8x128xf32>
    %c0_19 = arith.constant 0 : index
    %c4_20 = arith.constant 4 : index
    %74 = vector.load %arg3[%c0_19, %c4_20] : memref<8x5xi32, #tpu.memory_space<vmem>>, vector<8x1xi32>
    %c64_i32_21 = arith.constant 64 : i32
    %75 = vector.broadcast %c64_i32_21 : i32 to vector<8x1xi32>
    %76 = arith.addi %74, %75 : vector<8x1xi32>
    %77 = vector.broadcast %76 : vector<8x1xi32> to vector<8x128xi32>
    %78 = arith.cmpi eq, %42, %77 : vector<8x128xi32>
    %79 = arith.extui %78 : vector<8x128xi1> to vector<8x128xi32>
    %80 = arith.sitofp %79 : vector<8x128xi32> to vector<8x128xf32>
    %81 = arith.addf %73, %80 : vector<8x128xf32>
    %c0_22 = arith.constant 0 : index
    %c0_23 = arith.constant 0 : index
    %82 = vector.load %arg4[%c0_22, %c0_23] : memref<128x160xf32, #tpu.memory_space<vmem>>, vector<128x160xf32>
    %cst_24 = arith.constant dense<0.000000e+00> : vector<8x160xf32>
    %83 = tpu.matmul %81, %82, %cst_24 {dimension_numbers = #tpu.dot_dimension_numbers<[1], [0], [0], [1], [0, 0, 1, 1], [], []>} : vector<8x128xf32>, vector<128x160xf32>, vector<8x160xf32> -> vector<8x160xf32>
    %c0_25 = arith.constant 0 : index
    %c0_26 = arith.constant 0 : index
    %84 = vector.load %arg5[%c0_25, %c0_26] : memref<160x160xf32, #tpu.memory_space<vmem>>, vector<160x160xf32>
    %cst_27 = arith.constant dense<0.000000e+00> : vector<8x160xf32>
    %85 = tpu.matmul %83, %84, %cst_27 {dimension_numbers = #tpu.dot_dimension_numbers<[1], [0], [0], [1], [0, 0, 1, 1], [], []>} : vector<8x160xf32>, vector<160x160xf32>, vector<8x160xf32> -> vector<8x160xf32>
    %c0_28 = arith.constant 0 : index
    %c0_29 = arith.constant 0 : index
    %86 = vector.load %arg8[%c0_28, %c0_29] : memref<1x160xf32, #tpu.memory_space<vmem>>, vector<1x160xf32>
    %87 = vector.broadcast %86 : vector<1x160xf32> to vector<8x160xf32>
    %88 = arith.addf %85, %87 : vector<8x160xf32>
    %c0_30 = arith.constant 0 : index
    %c0_31 = arith.constant 0 : index
    %89 = vector.load %arg6[%c0_30, %c0_31] : memref<160x160xf32, #tpu.memory_space<vmem>>, vector<160x160xf32>
    %cst_32 = arith.constant dense<0.000000e+00> : vector<8x160xf32>
    %90 = tpu.matmul %41, %89, %cst_32 {dimension_numbers = #tpu.dot_dimension_numbers<[1], [0], [0], [1], [0, 0, 1, 1], [], []>} : vector<8x160xf32>, vector<160x160xf32>, vector<8x160xf32> -> vector<8x160xf32>
    %91 = vector.shape_cast %41 : vector<8x160xf32> to vector<8x1x160xf32>
    %92 = vector.shape_cast %83 : vector<8x160xf32> to vector<1x8x160xf32>
    %93 = vector.broadcast %91 : vector<8x1x160xf32> to vector<8x8x160xf32>
    %94 = vector.broadcast %92 : vector<1x8x160xf32> to vector<8x8x160xf32>
    %95 = arith.mulf %93, %94 : vector<8x8x160xf32>
    %96 = vector.shape_cast %95 : vector<8x8x160xf32> to vector<64x160xf32>
    %c0_33 = arith.constant 0 : index
    %c0_34 = arith.constant 0 : index
    %97 = vector.load %arg7[%c0_33, %c0_34] : memref<160x160xf32, #tpu.memory_space<vmem>>, vector<160x160xf32>
    %cst_35 = arith.constant dense<0.000000e+00> : vector<64x160xf32>
    %98 = tpu.matmul %96, %97, %cst_35 {dimension_numbers = #tpu.dot_dimension_numbers<[1], [0], [0], [1], [0, 0, 1, 1], [], []>} : vector<64x160xf32>, vector<160x160xf32>, vector<64x160xf32> -> vector<64x160xf32>
    %99 = vector.shape_cast %98 : vector<64x160xf32> to vector<8x8x160xf32>
    %100 = vector.shape_cast %88 : vector<8x160xf32> to vector<1x8x160xf32>
    %101 = vector.broadcast %100 : vector<1x8x160xf32> to vector<8x8x160xf32>
    %102 = arith.addf %99, %101 : vector<8x8x160xf32>
    %103 = vector.shape_cast %90 : vector<8x160xf32> to vector<8x1x160xf32>
    %104 = vector.broadcast %103 : vector<8x1x160xf32> to vector<8x8x160xf32>
    %105 = arith.addf %102, %104 : vector<8x8x160xf32>
    %cst_36 = arith.constant 0.000000e+00 : f32
    %106 = vector.broadcast %cst_36 : f32 to vector<8x8x160xf32>
    %107 = arith.maximumf %105, %106 : vector<8x8x160xf32>
    %c0_37 = arith.constant 0 : index
    %c0_38 = arith.constant 0 : index
    %c0_39 = arith.constant 0 : index
    %108 = vector.load %arg9[%c0_37, %c0_38, %c0_39] : memref<8x8x160xf32, #tpu.memory_space<vmem>>, vector<8x8x160xf32>
    tpu.vector_store %arg9[%c0_37, %c0_38, %c0_39], %107 {strides = array<i32>} : memref<8x8x160xf32, #tpu.memory_space<vmem>>, vector<8x8x160xf32>,
    return
  }
  func.func @transform_0(%arg0: i32, %arg1: i32) -> (i32, i32) {
    %c0_i32 = arith.constant 0 : i32
    %c0_i32_0 = arith.constant 0 : i32
    return %arg0, %c0_i32 : i32, i32
  }
  func.func @transform_1(%arg0: i32, %arg1: i32) -> (i32, i32) {
    %c0_i32 = arith.constant 0 : i32
    %c0_i32_0 = arith.constant 0 : i32
    return %arg1, %c0_i32 : i32, i32
  }
  func.func @transform_2(%arg0: i32, %arg1: i32) -> (i32, i32) {
    %c0_i32 = arith.constant 0 : i32
    %c0_i32_0 = arith.constant 0 : i32
    %c0_i32_1 = arith.constant 0 : i32
    return %c0_i32, %c0_i32_0 : i32, i32
  }
  func.func @transform_3(%arg0: i32, %arg1: i32) -> (i32, i32) {
    %c0_i32 = arith.constant 0 : i32
    %c0_i32_0 = arith.constant 0 : i32
    %c0_i32_1 = arith.constant 0 : i32
    return %c0_i32, %c0_i32_0 : i32, i32
  }
  func.func @transform_4(%arg0: i32, %arg1: i32) -> (i32, i32) {
    %c0_i32 = arith.constant 0 : i32
    %c0_i32_0 = arith.constant 0 : i32
    %c0_i32_1 = arith.constant 0 : i32
    return %c0_i32, %c0_i32_0 : i32, i32
  }
  func.func @transform_5(%arg0: i32, %arg1: i32) -> (i32, i32) {
    %c0_i32 = arith.constant 0 : i32
    %c0_i32_0 = arith.constant 0 : i32
    %c0_i32_1 = arith.constant 0 : i32
    return %c0_i32, %c0_i32_0 : i32, i32
  }
  func.func @transform_6(%arg0: i32, %arg1: i32) -> (i32, i32) {
    %c0_i32 = arith.constant 0 : i32
    %c0_i32_0 = arith.constant 0 : i32
    %c0_i32_1 = arith.constant 0 : i32
    return %c0_i32, %c0_i32_0 : i32, i32
  }
  func.func @transform_7(%arg0: i32, %arg1: i32) -> (i32, i32, i32) {
    %c0_i32 = arith.constant 0 : i32
    %c0_i32_0 = arith.constant 0 : i32
    return %arg0, %arg1, %c0_i32 : i32, i32, i32
  }
}

</mosaic_0001>

<llo_original>
// kernel: fwd.1
$region0: #{fwd.1}
  #allocation0 [shape = 'u32[]', space=smem, size = 0x4, offset = 0x4, fixed_abs, tag = 'smem constant byte address 0x4 - core index']
  #allocation1 [shape = 'u32[72,128]{1,0:T(1,128)}', space=vmem, size = 0x9000, scoped, tag = 'internal scratch']
  %s0 = inlined_call_operand.vmem [shape: s32[8,5], index: 0, kind: input, shape index: {}, may-alias: {0,1}]
  %s1 = inlined_call_operand.vmem [shape: s32[8,5], index: 1, kind: input, shape index: {}, may-alias: {0,1}]
  %s2 = inlined_call_operand.vmem [shape: f32[128,160], index: 2, kind: input, shape index: {}]
  %s3 = inlined_call_operand.vmem [shape: f32[160,160], index: 3, kind: input, shape index: {}]
  %s4 = inlined_call_operand.hbm [shape: f32[160,160], index: 4, kind: input, shape index: {}]
  %s5 = inlined_call_operand.hbm [shape: f32[160,160], index: 5, kind: input, shape index: {}]
  %s6 = inlined_call_operand.vmem [shape: f32[1,160], index: 6, kind: input, shape index: {}]
  %s7 = inlined_call_operand.hbm [shape: f32[8,8,160], index: 7, kind: output, shape index: {}]
  %s8 = sld [smem:[#allocation0]]
  $region46: #{fwd.1} parent=0
    _
  %s10 = ssub.s32 1, %s8
  %s11 = scalar_select 0, %s10, %s8
  $region1: #{fwd.1} parent=0
    #allocation2 [shape = 'u8[163840]{0}', space=vmem, size = 0x28000, scoped, tag = 'input window, operand 4, single buffered']
    #allocation3 [shape = 's32[1]{0}', space=sflag, size = 0x4, scoped, tag = 'scoped memory for fwd.1']
    #allocation4 [shape = 's32[1]{0}', space=sflag, size = 0x4, scoped, tag = 'scoped memory for fwd.1']
    #allocation5 [shape = 'u8[163840]{0}', space=vmem, size = 0x28000, scoped, tag = 'input window, operand 5, single buffered']
    #allocation6 [shape = 's32[1]{0}', space=sflag, size = 0x4, scoped, tag = 'scoped memory for fwd.1']
    #allocation7 [shape = 'u8[65536]{0}', space=vmem, size = 0x10000, scoped, tag = 'output window, operand 0, single buffered']
    %12 = vsyncpa [#allocation3], 0
    %13 = vsyncpa [#allocation6], 0
    %14 = vsyncpa [#allocation4], 0
    // Predicated region
    $region2: #{fwd.1} parent=1 // pred_check
      _
    $region3: #{fwd.1} parent=1 // pred_check_branch
      %16 = sbr.rel (0) target = $region5
    $region4: #{fwd.1} parent=1 // pred_region
      _
    $region5: #{fwd.1} parent=1 // pred_fallthru
      _
    // Predicated region
    $region6: #{fwd.1} parent=1 // pred_check
      _
    $region7: #{fwd.1} parent=1 // pred_check_branch
      %18 = sbr.rel (0) target = $region9
    $region8: #{fwd.1} parent=1 // pred_region
      _
    $region9: #{fwd.1} parent=1 // pred_fallthru
      _
    // Predicated region
    $region10: #{fwd.1} parent=1 // pred_check
      _
    $region11: #{fwd.1} parent=1 // pred_check_branch
      %20 = sbr.rel (0) target = $region13
    $region12: #{fwd.1} parent=1 // pred_region
      _
    $region13: #{fwd.1} parent=1 // pred_fallthru
      _
    // Predicated region
    $region14: #{fwd.1} parent=1 // pred_check
      _
    $region15: #{fwd.1} parent=1 // pred_check_branch
      %22 = sbr.rel (0) target = $region17
    $region16: #{fwd.1} parent=1 // pred_region
      _
    $region17: #{fwd.1} parent=1 // pred_fallthru
      _
    // Predicated region
    $region18: #{fwd.1} parent=1 // pred_check
      _
    $region19: #{fwd.1} parent=1 // pred_check_branch
      %24 = sbr.rel (0) target = $region21
    $region20: #{fwd.1} parent=1 // pred_region
      %26 = vsyncadd [#allocation3], 0
      %s27 = sshll.u32 %s4, 4
      %s28 = int_to_ptr.hbm [resolvable:$true] %s27
      %s29 = sshll.u32 [#allocation2], 4
      %s30 = int_to_ptr.vmem [resolvable:$true] %s29
      %35 = dma.hbm_to_vmem [thread:$0]  %s28, 5120, %s30, [#allocation3], 256, 256, 16
    $region21: #{fwd.1} parent=1 // pred_fallthru
      _
    // Predicated region
    $region22: #{fwd.1} parent=1 // pred_check
      _
    $region23: #{fwd.1} parent=1 // pred_check_branch
      %37 = sbr.rel (0) target = $region25
    $region24: #{fwd.1} parent=1 // pred_region
      %39 = vsyncadd [#allocation6], 0
      %s40 = sshll.u32 %s5, 4
      %s41 = int_to_ptr.hbm [resolvable:$true] %s40
      %s42 = sshll.u32 [#allocation5], 4
      %s43 = int_to_ptr.vmem [resolvable:$true] %s42
      %48 = dma.hbm_to_vmem [thread:$0]  %s41, 5120, %s43, [#allocation6], 256, 256, 16
    $region25: #{fwd.1} parent=1 // pred_fallthru
      _
    // Predicated region
    $region26: #{fwd.1} parent=1 // pred_check
      _
    $region27: #{fwd.1} parent=1 // pred_check_branch
      %50 = sbr.rel (0) target = $region29
    $region28: #{fwd.1} parent=1 // pred_region
      _
    $region29: #{fwd.1} parent=1 // pred_fallthru
      _
    // Predicated region
    $region30: #{fwd.1} parent=1 // pred_check
      _
    $region31: #{fwd.1} parent=1 // pred_check_branch
      %52 = sbr.rel (0) target = $region33
    $region32: #{fwd.1} parent=1 // pred_region
      %54 = dma.done [#allocation3], 5120
    $region33: #{fwd.1} parent=1 // pred_fallthru
      _
    // Predicated region
    $region34: #{fwd.1} parent=1 // pred_check
      _
    $region35: #{fwd.1} parent=1 // pred_check_branch
      %56 = sbr.rel (0) target = $region37
    $region36: #{fwd.1} parent=1 // pred_region
      %58 = dma.done [#allocation6], 5120
    $region37: #{fwd.1} parent=1 // pred_fallthru
      _
    %v59 = vlaneseq
    %v60 = vand.u32 %v59, 127
    %v61 = vld [vmem:[%s0] sm:$0xff]
    %62 = vset.pattern.permute.xlu0 0
    %63 = vperm.xlu0 %62, %v61
    %v64 = vpop.permute.xlu0 %63
    %vm65 = vcmp.eq.s32.totalorder %v60, %v64
    %v66 = vsel %vm65, 1, 0
    %v67 = vcvt.s32.f32 %v66
    %v68 = vadd.s32 %v61, 16
    %69 = vset.pattern.permute.xlu0 1
    %70 = vperm.xlu0 %69, %v68
    %v71 = vpop.permute.xlu0 %70
    %vm72 = vcmp.eq.s32.totalorder %v60, %v71
    %v73 = vsel %vm72, 1, 0
    %v74 = vcvt.s32.f32 %v73
    %v75 = vadd.f32 %v67, %v74
    %v76 = vadd.s32 %v61, 32
    %77 = vset.pattern.permute.xlu0 2
    %78 = vperm.xlu0 %77, %v76
    %v79 = vpop.permute.xlu0 %78
    %vm80 = vcmp.eq.s32.totalorder %v60, %v79
    %v81 = vsel %vm80, 1, 0
    %v82 = vcvt.s32.f32 %v81
    %v83 = vadd.f32 %v75, %v82
    %v84 = vadd.s32 %v61, 48
    %85 = vset.pattern.permute.xlu0 3
    %86 = vperm.xlu0 %85, %v84
    %v87 = vpop.permute.xlu0 %86
    %vm88 = vcmp.eq.s32.totalorder %v60, %v87
    %v89 = vsel %vm88, 1, 0
    %v90 = vcvt.s32.f32 %v89
    %v91 = vadd.f32 %v83, %v90
    %v92 = vadd.s32 %v61, 64
    %93 = vset.pattern.permute.xlu0 4
    %94 = vperm.xlu0 %93, %v92
    %v95 = vpop.permute.xlu0 %94
    %vm96 = vcmp.eq.s32.totalorder %v60, %v95
    %v97 = vsel %vm96, 1, 0
    %v98 = vcvt.s32.f32 %v97
    %v99 = vadd.f32 %v91, %v98
    %v100 = vld [vmem:[%s2] sm:$0xff]
    %v101 = vld [vmem:[%s2 + $0x8] sm:$0xff]
    %v102 = vld [vmem:[%s2 + $0x10] sm:$0xff]
    %v103 = vld [vmem:[%s2 + $0x18] sm:$0xff]
    %v104 = vld [vmem:[%s2 + $0x20] sm:$0xff]
    %v105 = vld [vmem:[%s2 + $0x28] sm:$0xff]
    %v106 = vld [vmem:[%s2 + $0x30] sm:$0xff]
    %v107 = vld [vmem:[%s2 + $0x38] sm:$0xff]
    %v108 = vld [vmem:[%s2 + $0x40] sm:$0xff]
    %v109 = vld [vmem:[%s2 + $0x48] sm:$0xff]
    %v110 = vld [vmem:[%s2 + $0x50] sm:$0xff]
    %v111 = vld [vmem:[%s2 + $0x58] sm:$0xff]
    %v112 = vld [vmem:[%s2 + $0x60] sm:$0xff]
    %v113 = vld [vmem:[%s2 + $0x68] sm:$0xff]
    %v114 = vld [vmem:[%s2 + $0x70] sm:$0xff]
    %v115 = vld [vmem:[%s2 + $0x78] sm:$0xff]
    %v116 = vld [vmem:[%s2 + $0x80] sm:$0xff]
    %v117 = vld [vmem:[%s2 + $0x88] sm:$0xff]
    %v118 = vld [vmem:[%s2 + $0x90] sm:$0xff]
    %v119 = vld [vmem:[%s2 + $0x98] sm:$0xff]
    %v120 = vld [vmem:[%s2 + $0xa0] sm:$0xff]
    %v121 = vld [vmem:[%s2 + $0xa8] sm:$0xff]
    %v122 = vld [vmem:[%s2 + $0xb0] sm:$0xff]
    %v123 = vld [vmem:[%s2 + $0xb8] sm:$0xff]
    %v124 = vld [vmem:[%s2 + $0xc0] sm:$0xff]
    %v125 = vld [vmem:[%s2 + $0xc8] sm:$0xff]
    %v126 = vld [vmem:[%s2 + $0xd0] sm:$0xff]
    %v127 = vld [vmem:[%s2 + $0xd8] sm:$0xff]
    %v128 = vld [vmem:[%s2 + $0xe0] sm:$0xff]
    %v129 = vld [vmem:[%s2 + $0xe8] sm:$0xff]
    %v130 = vld [vmem:[%s2 + $0xf0] sm:$0xff]
    %v131 = vld [vmem:[%s2 + $0xf8] sm:$0xff]
    %132 = vmatpush.msra.mxu0 %v130
    %133 = vmatpush.msra.mxu0 %v128
    %134 = vmatpush.msra.mxu0 %v126
    %135 = vmatpush.msra.mxu0 %v124
    %136 = vmatpush.msra.mxu0 %v122
    %137 = vmatpush.msra.mxu0 %v120
    %138 = vmatpush.msra.mxu0 %v118
    %139 = vmatpush.msra.mxu0 %v116
    %140 = vmatpush.msra.mxu0 %v114
    %141 = vmatpush.msra.mxu0 %v112
    %142 = vmatpush.msra.mxu0 %v110
    %143 = vmatpush.msra.mxu0 %v108
    %144 = vmatpush.msra.mxu0 %v106
    %145 = vmatpush.msra.mxu0 %v104
    %146 = vmatpush.msra.mxu0 %v102
    %147 = vmatpush.msra.mxu0 %v100
    %148 = vmatmul.f32.gmra.mxu0 %v99
    %v149 = vpop.f32.mrf.mxu0
    %v150 = vadd.f32 0.0, %v149
    %151 = vdwg.mxu0
    %152 = vmatpush.msra.mxu0 %v131
    %153 = vmatpush.msra.mxu0 %v129
    %154 = vmatpush.msra.mxu0 %v127
    %155 = vmatpush.msra.mxu0 %v125
    %156 = vmatpush.msra.mxu0 %v123
    %157 = vmatpush.msra.mxu0 %v121
    %158 = vmatpush.msra.mxu0 %v119
    %159 = vmatpush.msra.mxu0 %v117
    %160 = vmatpush.msra.mxu0 %v115
    %161 = vmatpush.msra.mxu0 %v113
    %162 = vmatpush.msra.mxu0 %v111
    %163 = vmatpush.msra.mxu0 %v109
    %164 = vmatpush.msra.mxu0 %v107
    %165 = vmatpush.msra.mxu0 %v105
    %166 = vmatpush.msra.mxu0 %v103
    %167 = vmatpush.msra.mxu0 %v101
    %168 = vmatmul.f32.gmra.mxu0 %v99
    %v169 = vpop.f32.mrf.mxu0
    %v170 = vadd.f32 0.0, %v169
    %171 = vdwg.mxu0
    %v172 = vld [vmem:[%s1] sm:$0xff]
    %173 = vset.pattern.permute.xlu0 0
    %174 = vperm.xlu0 %173, %v172
    %v175 = vpop.permute.xlu0 %174
    %vm176 = vcmp.eq.s32.totalorder %v60, %v175
    %v177 = vsel %vm176, 1, 0
    %v178 = vcvt.s32.f32 %v177
    %v179 = vadd.s32 %v172, 16
    %180 = vset.pattern.permute.xlu0 1
    %181 = vperm.xlu0 %180, %v179
    %v182 = vpop.permute.xlu0 %181
    %vm183 = vcmp.eq.s32.totalorder %v60, %v182
    %v184 = vsel %vm183, 1, 0
    %v185 = vcvt.s32.f32 %v184
    %v186 = vadd.f32 %v178, %v185
    %v187 = vadd.s32 %v172, 32
    %188 = vset.pattern.permute.xlu0 2
    %189 = vperm.xlu0 %188, %v187
    %v190 = vpop.permute.xlu0 %189
    %vm191 = vcmp.eq.s32.totalorder %v60, %v190
    %v192 = vsel %vm191, 1, 0
    %v193 = vcvt.s32.f32 %v192
    %v194 = vadd.f32 %v186, %v193
    %v195 = vadd.s32 %v172, 48
    %196 = vset.pattern.permute.xlu0 3
    %197 = vperm.xlu0 %196, %v195
    %v198 = vpop.permute.xlu0 %197
    %vm199 = vcmp.eq.s32.totalorder %v60, %v198
    %v200 = vsel %vm199, 1, 0
    %v201 = vcvt.s32.f32 %v200
    %v202 = vadd.f32 %v194, %v201
    %v203 = vadd.s32 %v172, 64
    %204 = vset.pattern.permute.xlu0 4
    %205 = vperm.xlu0 %204, %v203
    %v206 = vpop.permute.xlu0 %205
    %vm207 = vcmp.eq.s32.totalorder %v60, %v206
    %v208 = vsel %vm207, 1, 0
    %v209 = vcvt.s32.f32 %v208
    %v210 = vadd.f32 %v202, %v209
    %211 = vmatpush.msra.mxu0 %v130
    %212 = vmatpush.msra.mxu0 %v128
    %213 = vmatpush.msra.mxu0 %v126
    %214 = vmatpush.msra.mxu0 %v124
    %215 = vmatpush.msra.mxu0 %v122
    %216 = vmatpush.msra.mxu0 %v120
    %217 = vmatpush.msra.mxu0 %v118
    %218 = vmatpush.msra.mxu0 %v116
    %219 = vmatpush.msra.mxu0 %v114
    %220 = vmatpush.msra.mxu0 %v112
    %221 = vmatpush.msra.mxu0 %v110
    %222 = vmatpush.msra.mxu0 %v108
    %223 = vmatpush.msra.mxu0 %v106
    %224 = vmatpush.msra.mxu0 %v104
    %225 = vmatpush.msra.mxu0 %v102
    %226 = vmatpush.msra.mxu0 %v100
    %227 = vmatmul.f32.gmra.mxu0 %v210
    %v228 = vpop.f32.mrf.mxu0
    %v229 = vadd.f32 0.0, %v228
    %230 = vdwg.mxu0
    %231 = vmatpush.msra.mxu0 %v131
    %232 = vmatpush.msra.mxu0 %v129
    %233 = vmatpush.msra.mxu0 %v127
    %234 = vmatpush.msra.mxu0 %v125
    %235 = vmatpush.msra.mxu0 %v123
    %236 = vmatpush.msra.mxu0 %v121
    %237 = vmatpush.msra.mxu0 %v119
    %238 = vmatpush.msra.mxu0 %v117
    %239 = vmatpush.msra.mxu0 %v115
    %240 = vmatpush.msra.mxu0 %v113
    %241 = vmatpush.msra.mxu0 %v111
    %242 = vmatpush.msra.mxu0 %v109
    %243 = vmatpush.msra.mxu0 %v107
    %244 = vmatpush.msra.mxu0 %v105
    %245 = vmatpush.msra.mxu0 %v103
    %246 = vmatpush.msra.mxu0 %v101
    %247 = vmatmul.f32.gmra.mxu0 %v210
    %v248 = vpop.f32.mrf.mxu0
    %v249 = vadd.f32 0.0, %v248
    %250 = vdwg.mxu0
    %v251 = vld [vmem:[%s3] sm:$0xff]
    %v252 = vld [vmem:[%s3 + $0x8] sm:$0xff]
    %v253 = vld [vmem:[%s3 + $0x10] sm:$0xff]
    %v254 = vld [vmem:[%s3 + $0x18] sm:$0xff]
    %v255 = vld [vmem:[%s3 + $0x20] sm:$0xff]
    %v256 = vld [vmem:[%s3 + $0x28] sm:$0xff]
    %v257 = vld [vmem:[%s3 + $0x30] sm:$0xff]
    %v258 = vld [vmem:[%s3 + $0x38] sm:$0xff]
    %v259 = vld [vmem:[%s3 + $0x40] sm:$0xff]
    %v260 = vld [vmem:[%s3 + $0x48] sm:$0xff]
    %v261 = vld [vmem:[%s3 + $0x50] sm:$0xff]
    %v262 = vld [vmem:[%s3 + $0x58] sm:$0xff]
    %v263 = vld [vmem:[%s3 + $0x60] sm:$0xff]
    %v264 = vld [vmem:[%s3 + $0x68] sm:$0xff]
    %v265 = vld [vmem:[%s3 + $0x70] sm:$0xff]
    %v266 = vld [vmem:[%s3 + $0x78] sm:$0xff]
    %v267 = vld [vmem:[%s3 + $0x80] sm:$0xff]
    %v268 = vld [vmem:[%s3 + $0x88] sm:$0xff]
    %v269 = vld [vmem:[%s3 + $0x90] sm:$0xff]
    %v270 = vld [vmem:[%s3 + $0x98] sm:$0xff]
    %v271 = vld [vmem:[%s3 + $0xa0] sm:$0xff]
    %v272 = vld [vmem:[%s3 + $0xa8] sm:$0xff]
    %v273 = vld [vmem:[%s3 + $0xb0] sm:$0xff]
    %v274 = vld [vmem:[%s3 + $0xb8] sm:$0xff]
    %v275 = vld [vmem:[%s3 + $0xc0] sm:$0xff]
    %v276 = vld [vmem:[%s3 + $0xc8] sm:$0xff]
    %v277 = vld [vmem:[%s3 + $0xd0] sm:$0xff]
    %v278 = vld [vmem:[%s3 + $0xd8] sm:$0xff]
    %v279 = vld [vmem:[%s3 + $0xe0] sm:$0xff]
    %v280 = vld [vmem:[%s3 + $0xe8] sm:$0xff]
    %v281 = vld [vmem:[%s3 + $0xf0] sm:$0xff]
    %v282 = vld [vmem:[%s3 + $0xf8] sm:$0xff]
    %v283 = vld [vmem:[%s3 + $0x100] sm:$0xff]
    %v284 = vld [vmem:[%s3 + $0x108] sm:$0xff]
    %v285 = vld [vmem:[%s3 + $0x110] sm:$0xff]
    %v286 = vld [vmem:[%s3 + $0x118] sm:$0xff]
    %v287 = vld [vmem:[%s3 + $0x120] sm:$0xff]
    %v288 = vld [vmem:[%s3 + $0x128] sm:$0xff]
    %v289 = vld [vmem:[%s3 + $0x130] sm:$0xff]
    %v290 = vld [vmem:[%s3 + $0x138] sm:$0xff]
    %v291 = vld [vmem:[%s6] sm:$0x3]
    %v293 = vperm.slane %v291, 0
    %v294 = vperm.slane %v291, 1
    %vm297 = vcmask 261120
    %v299 = vsel %vm297, %v249, 0
    %301 = vmatpush.msra.mxu0 %v281
    %302 = vmatpush.msra.mxu0 %v279
    %303 = vmatpush.msra.mxu0 %v277
    %304 = vmatpush.msra.mxu0 %v275
    %305 = vmatpush.msra.mxu0 %v273
    %306 = vmatpush.msra.mxu0 %v271
    %307 = vmatpush.msra.mxu0 %v269
    %308 = vmatpush.msra.mxu0 %v267
    %309 = vmatpush.msra.mxu0 %v265
    %310 = vmatpush.msra.mxu0 %v263
    %311 = vmatpush.msra.mxu0 %v261
    %312 = vmatpush.msra.mxu0 %v259
    %313 = vmatpush.msra.mxu0 %v257
    %314 = vmatpush.msra.mxu0 %v255
    %315 = vmatpush.msra.mxu0 %v253
    %316 = vmatpush.msra.mxu0 %v251
    %317 = vmatmul.f32.gmra.mxu0 %v229
    %v318 = vpop.f32.mrf.mxu0
    %v319 = vadd.f32 %v293, %v318
    %320 = vdwg.mxu0
    %321 = vmatpush.msra.mxu0 0.0
    %322 = vmatpush.msra.mxu0 0.0
    %323 = vmatpush.msra.mxu0 0.0
    %324 = vmatpush.msra.mxu0 0.0
    %325 = vmatpush.msra.mxu0 0.0
    %326 = vmatpush.msra.mxu0 0.0
    %327 = vmatpush.msra.mxu0 0.0
    %328 = vmatpush.msra.mxu0 0.0
    %329 = vmatpush.msra.mxu0 0.0
    %330 = vmatpush.msra.mxu0 0.0
    %331 = vmatpush.msra.mxu0 0.0
    %332 = vmatpush.msra.mxu0 0.0
    %333 = vmatpush.msra.mxu0 %v289
    %334 = vmatpush.msra.mxu0 %v287
    %335 = vmatpush.msra.mxu0 %v285
    %336 = vmatpush.msra.mxu0 %v283
    %337 = vmatmul.f32.gmra.mxu0 %v299
    %v338 = vpop.f32.mrf.mxu0
    %v339 = vadd.f32 %v319, %v338
    %340 = vdwg.mxu0
    %341 = vmatpush.msra.mxu0 %v282
    %342 = vmatpush.msra.mxu0 %v280
    %343 = vmatpush.msra.mxu0 %v278
    %344 = vmatpush.msra.mxu0 %v276
    %345 = vmatpush.msra.mxu0 %v274
    %346 = vmatpush.msra.mxu0 %v272
    %347 = vmatpush.msra.mxu0 %v270
    %348 = vmatpush.msra.mxu0 %v268
    %349 = vmatpush.msra.mxu0 %v266
    %350 = vmatpush.msra.mxu0 %v264
    %351 = vmatpush.msra.mxu0 %v262
    %352 = vmatpush.msra.mxu0 %v260
    %353 = vmatpush.msra.mxu0 %v258
    %354 = vmatpush.msra.mxu0 %v256
    %355 = vmatpush.msra.mxu0 %v254
    %356 = vmatpush.msra.mxu0 %v252
    %357 = vmatmul.f32.gmra.mxu0 %v229
    %v358 = vpop.f32.mrf.mxu0
    %v359 = vadd.f32 %v294, %v358
    %360 = vdwg.mxu0
    %361 = vmatpush.msra.mxu0 0.0
    %362 = vmatpush.msra.mxu0 0.0
    %363 = vmatpush.msra.mxu0 0.0
    %364 = vmatpush.msra.mxu0 0.0
    %365 = vmatpush.msra.mxu0 0.0
    %366 = vmatpush.msra.mxu0 0.0
    %367 = vmatpush.msra.mxu0 0.0
    %368 = vmatpush.msra.mxu0 0.0
    %369 = vmatpush.msra.mxu0 0.0
    %370 = vmatpush.msra.mxu0 0.0
    %371 = vmatpush.msra.mxu0 0.0
    %372 = vmatpush.msra.mxu0 0.0
    %373 = vmatpush.msra.mxu0 %v290
    %374 = vmatpush.msra.mxu0 %v288
    %375 = vmatpush.msra.mxu0 %v286
    %376 = vmatpush.msra.mxu0 %v284
    %377 = vmatmul.f32.gmra.mxu0 %v299
    %v378 = vpop.f32.mrf.mxu0
    %v379 = vadd.f32 %v359, %v378
    %380 = vdwg.mxu0
    %v381 = vld [vmem:[#allocation2] sm:$0xff]
    %v382 = vld [vmem:[#allocation2 + $0x8] sm:$0xff]
    %v383 = vld [vmem:[#allocation2 + $0x10] sm:$0xff]
    %v384 = vld [vmem:[#allocation2 + $0x18] sm:$0xff]
    %v385 = vld [vmem:[#allocation2 + $0x20] sm:$0xff]
    %v386 = vld [vmem:[#allocation2 + $0x28] sm:$0xff]
    %v387 = vld [vmem:[#allocation2 + $0x30] sm:$0xff]
    %v388 = vld [vmem:[#allocation2 + $0x38] sm:$0xff]
    %v389 = vld [vmem:[#allocation2 + $0x40] sm:$0xff]
    %v390 = vld [vmem:[#allocation2 + $0x48] sm:$0xff]
    %v391 = vld [vmem:[#allocation2 + $0x50] sm:$0xff]
    %v392 = vld [vmem:[#allocation2 + $0x58] sm:$0xff]
    %v393 = vld [vmem:[#allocation2 + $0x60] sm:$0xff]
    %v394 = vld [vmem:[#allocation2 + $0x68] sm:$0xff]
    %v395 = vld [vmem:[#allocation2 + $0x70] sm:$0xff]
    %v396 = vld [vmem:[#allocation2 + $0x78] sm:$0xff]
    %v397 = vld [vmem:[#allocation2 + $0x80] sm:$0xff]
    %v398 = vld [vmem:[#allocation2 + $0x88] sm:$0xff]
    %v399 = vld [vmem:[#allocation2 + $0x90] sm:$0xff]
    %v400 = vld [vmem:[#allocation2 + $0x98] sm:$0xff]
    %v401 = vld [vmem:[#allocation2 + $0xa0] sm:$0xff]
    %v402 = vld [vmem:[#allocation2 + $0xa8] sm:$0xff]
    %v403 = vld [vmem:[#allocation2 + $0xb0] sm:$0xff]
    %v404 = vld [vmem:[#allocation2 + $0xb8] sm:$0xff]
    %v405 = vld [vmem:[#allocation2 + $0xc0] sm:$0xff]
    %v406 = vld [vmem:[#allocation2 + $0xc8] sm:$0xff]
    %v407 = vld [vmem:[#allocation2 + $0xd0] sm:$0xff]
    %v408 = vld [vmem:[#allocation2 + $0xd8] sm:$0xff]
    %v409 = vld [vmem:[#allocation2 + $0xe0] sm:$0xff]
    %v410 = vld [vmem:[#allocation2 + $0xe8] sm:$0xff]
    %v411 = vld [vmem:[#allocation2 + $0xf0] sm:$0xff]
    %v412 = vld [vmem:[#allocation2 + $0xf8] sm:$0xff]
    %v413 = vld [vmem:[#allocation2 + $0x100] sm:$0xff]
    %v414 = vld [vmem:[#allocation2 + $0x108] sm:$0xff]
    %v415 = vld [vmem:[#allocation2 + $0x110] sm:$0xff]
    %v416 = vld [vmem:[#allocation2 + $0x118] sm:$0xff]
    %v417 = vld [vmem:[#allocation2 + $0x120] sm:$0xff]
    %v418 = vld [vmem:[#allocation2 + $0x128] sm:$0xff]
    %v419 = vld [vmem:[#allocation2 + $0x130] sm:$0xff]
    %v420 = vld [vmem:[#allocation2 + $0x138] sm:$0xff]
    %v422 = vsel %vm297, %v170, 0
    %424 = vmatpush.msra.mxu0 %v411
    %425 = vmatpush.msra.mxu0 %v409
    %426 = vmatpush.msra.mxu0 %v407
    %427 = vmatpush.msra.mxu0 %v405
    %428 = vmatpush.msra.mxu0 %v403
    %429 = vmatpush.msra.mxu0 %v401
    %430 = vmatpush.msra.mxu0 %v399
    %431 = vmatpush.msra.mxu0 %v397
    %432 = vmatpush.msra.mxu0 %v395
    %433 = vmatpush.msra.mxu0 %v393
    %434 = vmatpush.msra.mxu0 %v391
    %435 = vmatpush.msra.mxu0 %v389
    %436 = vmatpush.msra.mxu0 %v387
    %437 = vmatpush.msra.mxu0 %v385
    %438 = vmatpush.msra.mxu0 %v383
    %439 = vmatpush.msra.mxu0 %v381
    %440 = vmatmul.f32.gmra.mxu0 %v150
    %v441 = vpop.f32.mrf.mxu0
    %v442 = vadd.f32 0.0, %v441
    %443 = vdwg.mxu0
    %444 = vmatpush.msra.mxu0 0.0
    %445 = vmatpush.msra.mxu0 0.0
    %446 = vmatpush.msra.mxu0 0.0
    %447 = vmatpush.msra.mxu0 0.0
    %448 = vmatpush.msra.mxu0 0.0
    %449 = vmatpush.msra.mxu0 0.0
    %450 = vmatpush.msra.mxu0 0.0
    %451 = vmatpush.msra.mxu0 0.0
    %452 = vmatpush.msra.mxu0 0.0
    %453 = vmatpush.msra.mxu0 0.0
    %454 = vmatpush.msra.mxu0 0.0
    %455 = vmatpush.msra.mxu0 0.0
    %456 = vmatpush.msra.mxu0 %v419
    %457 = vmatpush.msra.mxu0 %v417
    %458 = vmatpush.msra.mxu0 %v415
    %459 = vmatpush.msra.mxu0 %v413
    %460 = vmatmul.f32.gmra.mxu0 %v422
    %v461 = vpop.f32.mrf.mxu0
    %v462 = vadd.f32 %v442, %v461
    %463 = vdwg.mxu0
    %464 = vmatpush.msra.mxu0 %v412
    %465 = vmatpush.msra.mxu0 %v410
    %466 = vmatpush.msra.mxu0 %v408
    %467 = vmatpush.msra.mxu0 %v406
    %468 = vmatpush.msra.mxu0 %v404
    %469 = vmatpush.msra.mxu0 %v402
    %470 = vmatpush.msra.mxu0 %v400
    %471 = vmatpush.msra.mxu0 %v398
    %472 = vmatpush.msra.mxu0 %v396
    %473 = vmatpush.msra.mxu0 %v394
    %474 = vmatpush.msra.mxu0 %v392
    %475 = vmatpush.msra.mxu0 %v390
    %476 = vmatpush.msra.mxu0 %v388
    %477 = vmatpush.msra.mxu0 %v386
    %478 = vmatpush.msra.mxu0 %v384
    %479 = vmatpush.msra.mxu0 %v382
    %480 = vmatmul.f32.gmra.mxu0 %v150
    %v481 = vpop.f32.mrf.mxu0
    %v482 = vadd.f32 0.0, %v481
    %483 = vdwg.mxu0
    %484 = vmatpush.msra.mxu0 0.0
    %485 = vmatpush.msra.mxu0 0.0
    %486 = vmatpush.msra.mxu0 0.0
    %487 = vmatpush.msra.mxu0 0.0
    %488 = vmatpush.msra.mxu0 0.0
    %489 = vmatpush.msra.mxu0 0.0
    %490 = vmatpush.msra.mxu0 0.0
    %491 = vmatpush.msra.mxu0 0.0
    %492 = vmatpush.msra.mxu0 0.0
    %493 = vmatpush.msra.mxu0 0.0
    %494 = vmatpush.msra.mxu0 0.0
    %495 = vmatpush.msra.mxu0 0.0
    %496 = vmatpush.msra.mxu0 %v420
    %497 = vmatpush.msra.mxu0 %v418
    %498 = vmatpush.msra.mxu0 %v416
    %499 = vmatpush.msra.mxu0 %v414
    %500 = vmatmul.f32.gmra.mxu0 %v422
    %v501 = vpop.f32.mrf.mxu0
    %v502 = vadd.f32 %v482, %v501
    %503 = vdwg.mxu0
    %v505 = vrot.slane %v170, 7
    %vm506 = vcmask 1040384
    %v507 = vsel %vm506, %v150, %v505
    %vm508 = vcmask 1041409
    %v509 = vsel %vm508, %v150, %v505
    %v510 = vrot.slane %v509, 1
    %vm511 = vcmask 1042434
    %v512 = vsel %vm511, %v150, %v505
    %v513 = vrot.slane %v512, 2
    %vm514 = vcmask 1043459
    %v515 = vsel %vm514, %v150, %v505
    %v516 = vrot.slane %v515, 3
    %vm517 = vcmask 1044484
    %v518 = vsel %vm517, %v150, %v505
    %v519 = vrot.slane %v518, 4
    %vm520 = vcmask 1045509
    %v521 = vsel %vm520, %v150, %v505
    %v522 = vrot.slane %v521, 5
    %vm523 = vcmask 1046534
    %v524 = vsel %vm523, %v150, %v505
    %v525 = vrot.slane %v524, 6
    %vm526 = vcmask 1046528
    %v527 = vsel %vm526, %v505, %v150
    %v528 = vrot.slane %v527, 7
    %v529 = vperm.slane %v507, 0
    %v530 = vperm.slane %v507, 1
    %v531 = vperm.slane %v510, 0
    %v532 = vperm.slane %v510, 1
    %v533 = vperm.slane %v513, 0
    %v534 = vperm.slane %v513, 1
    %v535 = vperm.slane %v516, 0
    %v536 = vperm.slane %v516, 1
    %v537 = vperm.slane %v519, 0
    %v538 = vperm.slane %v519, 1
    %v539 = vperm.slane %v522, 0
    %v540 = vperm.slane %v522, 1
    %v541 = vperm.slane %v525, 0
    %v542 = vperm.slane %v525, 1
    %v543 = vperm.slane %v528, 0
    %v544 = vperm.slane %v528, 1
    %v561 = vmul.f32 %v529, %v229
    %v562 = vmul.f32 %v530, %v249
    %v563 = vmul.f32 %v531, %v229
    %v564 = vmul.f32 %v532, %v249
    %v565 = vmul.f32 %v533, %v229
    %v566 = vmul.f32 %v534, %v249
    %v567 = vmul.f32 %v535, %v229
    %v568 = vmul.f32 %v536, %v249
    %v569 = vmul.f32 %v537, %v229
    %v570 = vmul.f32 %v538, %v249
    %v571 = vmul.f32 %v539, %v229
    %v572 = vmul.f32 %v540, %v249
    %v573 = vmul.f32 %v541, %v229
    %v574 = vmul.f32 %v542, %v249
    %v575 = vmul.f32 %v543, %v229
    %v576 = vmul.f32 %v544, %v249
    %v577 = vld [vmem:[#allocation5] sm:$0xff]
    %v578 = vld [vmem:[#allocation5 + $0x8] sm:$0xff]
    %v579 = vld [vmem:[#allocation5 + $0x10] sm:$0xff]
    %v580 = vld [vmem:[#allocation5 + $0x18] sm:$0xff]
    %v581 = vld [vmem:[#allocation5 + $0x20] sm:$0xff]
    %v582 = vld [vmem:[#allocation5 + $0x28] sm:$0xff]
    %v583 = vld [vmem:[#allocation5 + $0x30] sm:$0xff]
    %v584 = vld [vmem:[#allocation5 + $0x38] sm:$0xff]
    %v585 = vld [vmem:[#allocation5 + $0x40] sm:$0xff]
    %v586 = vld [vmem:[#allocation5 + $0x48] sm:$0xff]
    %v587 = vld [vmem:[#allocation5 + $0x50] sm:$0xff]
    %v588 = vld [vmem:[#allocation5 + $0x58] sm:$0xff]
    %v589 = vld [vmem:[#allocation5 + $0x60] sm:$0xff]
    %v590 = vld [vmem:[#allocation5 + $0x68] sm:$0xff]
    %v591 = vld [vmem:[#allocation5 + $0x70] sm:$0xff]
    %v592 = vld [vmem:[#allocation5 + $0x78] sm:$0xff]
    %v593 = vld [vmem:[#allocation5 + $0x80] sm:$0xff]
    %v594 = vld [vmem:[#allocation5 + $0x88] sm:$0xff]
    %v595 = vld [vmem:[#allocation5 + $0x90] sm:$0xff]
    %v596 = vld [vmem:[#allocation5 + $0x98] sm:$0xff]
    %v597 = vld [vmem:[#allocation5 + $0xa0] sm:$0xff]
    %v598 = vld [vmem:[#allocation5 + $0xa8] sm:$0xff]
    %v599 = vld [vmem:[#allocation5 + $0xb0] sm:$0xff]
    %v600 = vld [vmem:[#allocation5 + $0xb8] sm:$0xff]
    %v601 = vld [vmem:[#allocation5 + $0xc0] sm:$0xff]
    %v602 = vld [vmem:[#allocation5 + $0xc8] sm:$0xff]
    %v603 = vld [vmem:[#allocation5 + $0xd0] sm:$0xff]
    %v604 = vld [vmem:[#allocation5 + $0xd8] sm:$0xff]
    %v605 = vld [vmem:[#allocation5 + $0xe0] sm:$0xff]
    %v606 = vld [vmem:[#allocation5 + $0xe8] sm:$0xff]
    %v607 = vld [vmem:[#allocation5 + $0xf0] sm:$0xff]
    %v608 = vld [vmem:[#allocation5 + $0xf8] sm:$0xff]
    %v609 = vld [vmem:[#allocation5 + $0x100] sm:$0xff]
    %v610 = vld [vmem:[#allocation5 + $0x108] sm:$0xff]
    %v611 = vld [vmem:[#allocation5 + $0x110] sm:$0xff]
    %v612 = vld [vmem:[#allocation5 + $0x118] sm:$0xff]
    %v613 = vld [vmem:[#allocation5 + $0x120] sm:$0xff]
    %v614 = vld [vmem:[#allocation5 + $0x128] sm:$0xff]
    %v615 = vld [vmem:[#allocation5 + $0x130] sm:$0xff]
    %v616 = vld [vmem:[#allocation5 + $0x138] sm:$0xff]
    %v618 = vsel %vm297, %v562, 0
    %v621 = vsel %vm297, %v564, 0
    %v624 = vsel %vm297, %v566, 0
    %v627 = vsel %vm297, %v568, 0
    %v630 = vsel %vm297, %v570, 0
    %v633 = vsel %vm297, %v572, 0
    %v636 = vsel %vm297, %v574, 0
    %v639 = vsel %vm297, %v576, 0
    %641 = vmatpush.msra.mxu0 %v607
    %642 = vmatpush.msra.mxu0 %v605
    %643 = vmatpush.msra.mxu0 %v603
    %644 = vmatpush.msra.mxu0 %v601
    %645 = vmatpush.msra.mxu0 %v599
    %646 = vmatpush.msra.mxu0 %v597
    %647 = vmatpush.msra.mxu0 %v595
    %648 = vmatpush.msra.mxu0 %v593
    %649 = vmatpush.msra.mxu0 %v591
    %650 = vmatpush.msra.mxu0 %v589
    %651 = vmatpush.msra.mxu0 %v587
    %652 = vmatpush.msra.mxu0 %v585
    %653 = vmatpush.msra.mxu0 %v583
    %654 = vmatpush.msra.mxu0 %v581
    %655 = vmatpush.msra.mxu0 %v579
    %656 = vmatpush.msra.mxu0 %v577
    %657 = vmatmul.f32.gmra.mxu0 %v561
    %v658 = vpop.f32.mrf.mxu0
    %v659 = vadd.f32 0.0, %v658
    %660 = vmatmul.f32.gmra.mxu0 %v563
    %v661 = vpop.f32.mrf.mxu0
    %v662 = vadd.f32 0.0, %v661
    %663 = vmatmul.f32.gmra.mxu0 %v565
    %v664 = vpop.f32.mrf.mxu0
    %v665 = vadd.f32 0.0, %v664
    %666 = vmatmul.f32.gmra.mxu0 %v567
    %v667 = vpop.f32.mrf.mxu0
    %v668 = vadd.f32 0.0, %v667
    %669 = vmatmul.f32.gmra.mxu0 %v569
    %v670 = vpop.f32.mrf.mxu0
    %v671 = vadd.f32 0.0, %v670
    %672 = vmatmul.f32.gmra.mxu0 %v571
    %v673 = vpop.f32.mrf.mxu0
    %v674 = vadd.f32 0.0, %v673
    %675 = vmatmul.f32.gmra.mxu0 %v573
    %v676 = vpop.f32.mrf.mxu0
    %v677 = vadd.f32 0.0, %v676
    %678 = vmatmul.f32.gmra.mxu0 %v575
    %v679 = vpop.f32.mrf.mxu0
    %v680 = vadd.f32 0.0, %v679
    %681 = vdwg.mxu0
    %682 = vmatpush.msra.mxu0 0.0
    %683 = vmatpush.msra.mxu0 0.0
    %684 = vmatpush.msra.mxu0 0.0
    %685 = vmatpush.msra.mxu0 0.0
    %686 = vmatpush.msra.mxu0 0.0
    %687 = vmatpush.msra.mxu0 0.0
    %688 = vmatpush.msra.mxu0 0.0
    %689 = vmatpush.msra.mxu0 0.0
    %690 = vmatpush.msra.mxu0 0.0
    %691 = vmatpush.msra.mxu0 0.0
    %692 = vmatpush.msra.mxu0 0.0
    %693 = vmatpush.msra.mxu0 0.0
    %694 = vmatpush.msra.mxu0 %v615
    %695 = vmatpush.msra.mxu0 %v613
    %696 = vmatpush.msra.mxu0 %v611
    %697 = vmatpush.msra.mxu0 %v609
    %698 = vmatmul.f32.gmra.mxu0 %v618
    %v699 = vpop.f32.mrf.mxu0
    %v700 = vadd.f32 %v659, %v699
    %701 = vmatmul.f32.gmra.mxu0 %v621
    %v702 = vpop.f32.mrf.mxu0
    %v703 = vadd.f32 %v662, %v702
    %704 = vmatmul.f32.gmra.mxu0 %v624
    %v705 = vpop.f32.mrf.mxu0
    %v706 = vadd.f32 %v665, %v705
    %707 = vmatmul.f32.gmra.mxu0 %v627
    %v708 = vpop.f32.mrf.mxu0
    %v709 = vadd.f32 %v668, %v708
    %710 = vmatmul.f32.gmra.mxu0 %v630
    %v711 = vpop.f32.mrf.mxu0
    %v712 = vadd.f32 %v671, %v711
    %713 = vmatmul.f32.gmra.mxu0 %v633
    %v714 = vpop.f32.mrf.mxu0
    %v715 = vadd.f32 %v674, %v714
    %716 = vmatmul.f32.gmra.mxu0 %v636
    %v717 = vpop.f32.mrf.mxu0
    %v718 = vadd.f32 %v677, %v717
    %719 = vmatmul.f32.gmra.mxu0 %v639
    %v720 = vpop.f32.mrf.mxu0
    %v721 = vadd.f32 %v680, %v720
    %722 = vdwg.mxu0
    %723 = vmatpush.msra.mxu0 %v608
    %724 = vmatpush.msra.mxu0 %v606
    %725 = vmatpush.msra.mxu0 %v604
    %726 = vmatpush.msra.mxu0 %v602
    %727 = vmatpush.msra.mxu0 %v600
    %728 = vmatpush.msra.mxu0 %v598
    %729 = vmatpush.msra.mxu0 %v596
    %730 = vmatpush.msra.mxu0 %v594
    %731 = vmatpush.msra.mxu0 %v592
    %732 = vmatpush.msra.mxu0 %v590
    %733 = vmatpush.msra.mxu0 %v588
    %734 = vmatpush.msra.mxu0 %v586
    %735 = vmatpush.msra.mxu0 %v584
    %736 = vmatpush.msra.mxu0 %v582
    %737 = vmatpush.msra.mxu0 %v580
    %738 = vmatpush.msra.mxu0 %v578
    %739 = vmatmul.f32.gmra.mxu0 %v561
    %v740 = vpop.f32.mrf.mxu0
    %v741 = vadd.f32 0.0, %v740
    %742 = vmatmul.f32.gmra.mxu0 %v563
    %v743 = vpop.f32.mrf.mxu0
    %v744 = vadd.f32 0.0, %v743
    %745 = vmatmul.f32.gmra.mxu0 %v565
    %v746 = vpop.f32.mrf.mxu0
    %v747 = vadd.f32 0.0, %v746
    %748 = vmatmul.f32.gmra.mxu0 %v567
    %v749 = vpop.f32.mrf.mxu0
    %v750 = vadd.f32 0.0, %v749
    %751 = vmatmul.f32.gmra.mxu0 %v569
    %v752 = vpop.f32.mrf.mxu0
    %v753 = vadd.f32 0.0, %v752
    %754 = vmatmul.f32.gmra.mxu0 %v571
    %v755 = vpop.f32.mrf.mxu0
    %v756 = vadd.f32 0.0, %v755
    %757 = vmatmul.f32.gmra.mxu0 %v573
    %v758 = vpop.f32.mrf.mxu0
    %v759 = vadd.f32 0.0, %v758
    %760 = vmatmul.f32.gmra.mxu0 %v575
    %v761 = vpop.f32.mrf.mxu0
    %v762 = vadd.f32 0.0, %v761
    %763 = vdwg.mxu0
    %764 = vmatpush.msra.mxu0 0.0
    %765 = vmatpush.msra.mxu0 0.0
    %766 = vmatpush.msra.mxu0 0.0
    %767 = vmatpush.msra.mxu0 0.0
    %768 = vmatpush.msra.mxu0 0.0
    %769 = vmatpush.msra.mxu0 0.0
    %770 = vmatpush.msra.mxu0 0.0
    %771 = vmatpush.msra.mxu0 0.0
    %772 = vmatpush.msra.mxu0 0.0
    %773 = vmatpush.msra.mxu0 0.0
    %774 = vmatpush.msra.mxu0 0.0
    %775 = vmatpush.msra.mxu0 0.0
    %776 = vmatpush.msra.mxu0 %v616
    %777 = vmatpush.msra.mxu0 %v614
    %778 = vmatpush.msra.mxu0 %v612
    %779 = vmatpush.msra.mxu0 %v610
    %780 = vmatmul.f32.gmra.mxu0 %v618
    %v781 = vpop.f32.mrf.mxu0
    %v782 = vadd.f32 %v741, %v781
    %783 = vmatmul.f32.gmra.mxu0 %v621
    %v784 = vpop.f32.mrf.mxu0
    %v785 = vadd.f32 %v744, %v784
    %786 = vmatmul.f32.gmra.mxu0 %v624
    %v787 = vpop.f32.mrf.mxu0
    %v788 = vadd.f32 %v747, %v787
    %789 = vmatmul.f32.gmra.mxu0 %v627
    %v790 = vpop.f32.mrf.mxu0
    %v791 = vadd.f32 %v750, %v790
    %792 = vmatmul.f32.gmra.mxu0 %v630
    %v793 = vpop.f32.mrf.mxu0
    %v794 = vadd.f32 %v753, %v793
    %795 = vmatmul.f32.gmra.mxu0 %v633
    %v796 = vpop.f32.mrf.mxu0
    %v797 = vadd.f32 %v756, %v796
    %798 = vmatmul.f32.gmra.mxu0 %v636
    %v799 = vpop.f32.mrf.mxu0
    %v800 = vadd.f32 %v759, %v799
    %801 = vmatmul.f32.gmra.mxu0 %v639
    %v802 = vpop.f32.mrf.mxu0
    %v803 = vadd.f32 %v762, %v802
    %804 = vdwg.mxu0
    %v805 = vadd.f32 %v700, %v339
    %v806 = vadd.f32 %v782, %v379
    %v807 = vadd.f32 %v703, %v339
    %v808 = vadd.f32 %v785, %v379
    %v809 = vadd.f32 %v706, %v339
    %v810 = vadd.f32 %v788, %v379
    %v811 = vadd.f32 %v709, %v339
    %v812 = vadd.f32 %v791, %v379
    %v813 = vadd.f32 %v712, %v339
    %v814 = vadd.f32 %v794, %v379
    %v815 = vadd.f32 %v715, %v339
    %v816 = vadd.f32 %v797, %v379
    %v817 = vadd.f32 %v718, %v339
    %v818 = vadd.f32 %v800, %v379
    %v819 = vadd.f32 %v721, %v339
    %v820 = vadd.f32 %v803, %v379
    %v823 = vrot.slane %v502, 7
    %v824 = vsel %vm506, %v462, %v823
    %v825 = vsel %vm508, %v462, %v823
    %v826 = vrot.slane %v825, 1
    %v827 = vsel %vm511, %v462, %v823
    %v828 = vrot.slane %v827, 2
    %v829 = vsel %vm514, %v462, %v823
    %v830 = vrot.slane %v829, 3
    %v831 = vsel %vm517, %v462, %v823
    %v832 = vrot.slane %v831, 4
    %v833 = vsel %vm520, %v462, %v823
    %v834 = vrot.slane %v833, 5
    %v835 = vsel %vm523, %v462, %v823
    %v836 = vrot.slane %v835, 6
    %v837 = vsel %vm526, %v823, %v462
    %v838 = vrot.slane %v837, 7
    %v839 = vperm.slane %v824, 0
    %v840 = vperm.slane %v824, 1
    %v841 = vperm.slane %v826, 0
    %v842 = vperm.slane %v826, 1
    %v843 = vperm.slane %v828, 0
    %v844 = vperm.slane %v828, 1
    %v845 = vperm.slane %v830, 0
    %v846 = vperm.slane %v830, 1
    %v847 = vperm.slane %v832, 0
    %v848 = vperm.slane %v832, 1
    %v849 = vperm.slane %v834, 0
    %v850 = vperm.slane %v834, 1
    %v851 = vperm.slane %v836, 0
    %v852 = vperm.slane %v836, 1
    %v853 = vperm.slane %v838, 0
    %v854 = vperm.slane %v838, 1
    %v871 = vadd.f32 %v805, %v839
    %v872 = vadd.f32 %v806, %v840
    %v873 = vadd.f32 %v807, %v841
    %v874 = vadd.f32 %v808, %v842
    %v875 = vadd.f32 %v809, %v843
    %v876 = vadd.f32 %v810, %v844
    %v877 = vadd.f32 %v811, %v845
    %v878 = vadd.f32 %v812, %v846
    %v879 = vadd.f32 %v813, %v847
    %v880 = vadd.f32 %v814, %v848
    %v881 = vadd.f32 %v815, %v849
    %v882 = vadd.f32 %v816, %v850
    %v883 = vadd.f32 %v817, %v851
    %v884 = vadd.f32 %v818, %v852
    %v885 = vadd.f32 %v819, %v853
    %v886 = vadd.f32 %v820, %v854
    %v887 = vmax.f32 %v871, 0.0
    %v888 = vmax.f32 %v872, 0.0
    %v889 = vmax.f32 %v873, 0.0
    %v890 = vmax.f32 %v874, 0.0
    %v891 = vmax.f32 %v875, 0.0
    %v892 = vmax.f32 %v876, 0.0
    %v893 = vmax.f32 %v877, 0.0
    %v894 = vmax.f32 %v878, 0.0
    %v895 = vmax.f32 %v879, 0.0
    %v896 = vmax.f32 %v880, 0.0
    %v897 = vmax.f32 %v881, 0.0
    %v898 = vmax.f32 %v882, 0.0
    %v899 = vmax.f32 %v883, 0.0
    %v900 = vmax.f32 %v884, 0.0
    %v901 = vmax.f32 %v885, 0.0
    %v902 = vmax.f32 %v886, 0.0
    %903 = vst [vmem:[#allocation7] sm:$0xff] %v887
    %904 = vst.msk [vmem:[#allocation7 + $0x8] sm:$0xff] %vm297, %v888
    %905 = vst [vmem:[#allocation7 + $0x10] sm:$0xff] %v889
    %906 = vst.msk [vmem:[#allocation7 + $0x18] sm:$0xff] %vm297, %v890
    %907 = vst [vmem:[#allocation7 + $0x20] sm:$0xff] %v891
    %908 = vst.msk [vmem:[#allocation7 + $0x28] sm:$0xff] %vm297, %v892
    %909 = vst [vmem:[#allocation7 + $0x30] sm:$0xff] %v893
    %910 = vst.msk [vmem:[#allocation7 + $0x38] sm:$0xff] %vm297, %v894
    %911 = vst [vmem:[#allocation7 + $0x40] sm:$0xff] %v895
    %912 = vst.msk [vmem:[#allocation7 + $0x48] sm:$0xff] %vm297, %v896
    %913 = vst [vmem:[#allocation7 + $0x50] sm:$0xff] %v897
    %914 = vst.msk [vmem:[#allocation7 + $0x58] sm:$0xff] %vm297, %v898
    %915 = vst [vmem:[#allocation7 + $0x60] sm:$0xff] %v899
    %916 = vst.msk [vmem:[#allocation7 + $0x68] sm:$0xff] %vm297, %v900
    %917 = vst [vmem:[#allocation7 + $0x70] sm:$0xff] %v901
    %918 = vst.msk [vmem:[#allocation7 + $0x78] sm:$0xff] %vm297, %v902
    // Predicated region
    $region38: #{fwd.1} parent=1 // pred_check
      _
    $region39: #{fwd.1} parent=1 // pred_check_branch
      %920 = sbr.rel (0) target = $region41
    $region40: #{fwd.1} parent=1 // pred_region
      %922 = vsyncadd [#allocation4], 0
      %s923 = sshll.u32 [#allocation7], 4
      %s924 = int_to_ptr.vmem [resolvable:$true] %s923
      %s925 = sshll.u32 %s7, 4
      %s926 = int_to_ptr.hbm [resolvable:$true] %s925
      %931 = dma.vmem_to_hbm [thread:$0]  %s924, 2048, %s926, [#allocation4], 256, 256, 16
    $region41: #{fwd.1} parent=1 // pred_fallthru
      _
    // Predicated region
    $region42: #{fwd.1} parent=1 // pred_check
      _
    $region43: #{fwd.1} parent=1 // pred_check_branch
      %933 = sbr.rel (0) target = $region45
    $region44: #{fwd.1} parent=1 // pred_region
      %935 = dma.done [#allocation4], 2048
    $region45: #{fwd.1} parent=1 // pred_fallthru
      _
    %936 = vsyncpa [#allocation3], 1
    %937 = vsyncpa [#allocation6], 1
    %938 = vsyncpa [#allocation4], 1

</llo_original>
